<compile_context>
chip_gen: v7x
topology: tpu7x:2x2x1
jax: 0.10.0
libtpu: 0.0.40
codegen_flags: <defaults>
</compile_context>

<pallas_src>
import functools
from math import sqrt

import jax
import jax.numpy as jnp
from jax.experimental import pallas as pl
from jax.experimental.pallas import tpu as pltpu


def _st_full_attention_kernel(q_ref, k_ref, v_ref, mask_ref, o_ref, *,
                              num_heads, e_dim, d_dim, softmax_temp,
                              approx_reciprocal):
    # q_ref: (L, H*E)  k_ref: (S, H*E)  v_ref: (S, H*D)  o_ref: (L, H*D)
    # mask_ref: (L, S) f32, already pre-scaled by softmax_temp.
    mask = mask_ref[...]
    temp = jnp.asarray(softmax_temp, dtype=q_ref.dtype)

    # Static per-head loop (H is small); each head is a plain 2-D MXU matmul.
    # TODO(synk): for very large H, move heads onto a 'parallel' grid axis.
    for h in range(num_heads):
        # Fold softmax_temp into the (L, E) query tile (not the (L, S) scores).
        q_h = q_ref[:, pl.ds(h * e_dim, e_dim)] * temp          # (L, E)
        k_h = k_ref[:, pl.ds(h * e_dim, e_dim)]                 # (S, E)
        v_h = v_ref[:, pl.ds(h * d_dim, d_dim)]                 # (S, D)

        # temp * Q @ K^T with f32 accumulation on the MXU, plus pre-scaled mask.
        scores = jnp.einsum("le,se->ls", q_h, k_h,
                            preferred_element_type=jnp.float32) + mask  # (L,S)

        # Numerically stable softmax over S; normalization deferred until
        # after the PV matmul (S/D x fewer VPU multiplies).
        m = jnp.max(scores, axis=-1, keepdims=True)
        p = jnp.exp(scores - m)                                  # (L, S) f32
        denom = jnp.sum(p, axis=-1, keepdims=True)               # (L, 1) f32

        out_h = jnp.einsum("ls,sd->ld", p.astype(v_h.dtype), v_h,
                           preferred_element_type=jnp.float32)   # (L, D) f32
        if approx_reciprocal:
            inv = pl.reciprocal(denom, approx=True)              # EUP slot
        else:
            inv = 1.0 / denom
        o_ref[:, pl.ds(h * d_dim, d_dim)] = (out_h * inv).astype(o_ref.dtype)


def _vmem_limit_bytes():
    """Generation-aware VMEM limit: ~3/4 of physical capacity, capped."""
    try:
        cap = pltpu.get_tpu_info().vmem_capacity_bytes
    except Exception:
        cap = 64 * 1024 * 1024  # conservative (v7x-sized) fallback
    return int(min(cap * 3 // 4, 96 * 1024 * 1024))


def st_full_attention(queries, keys, values, additive_mask, softmax_temp=None,
                      query_lengths=None, key_lengths=None,
                      compute_dtype=jnp.bfloat16, approx_reciprocal=True):
    """Pallas implementation of STFullAttention.forward (dropout = identity).

    queries: (B, N, L, H, E)   keys: (B, N, S, H, E)   values: (B, N, S, H, D)
    additive_mask: (L, S) additive mask (0 where allowed, large negative where
        masked); applied exactly as softmax(temp * (QK + mask)).
    Returns: (B, N, L, H, D) in queries.dtype.
    """
    del query_lengths, key_lengths  # unused by the reference forward as well
    B, N, L, H, E = queries.shape
    _, _, S, _, D = values.shape
    temp = float(softmax_temp) if softmax_temp is not None else 1.0 / sqrt(E)

    # softmax(temp*(QK + mask)) == softmax(temp*QK + temp*mask): scale the tiny
    # mask once here; the kernel folds temp into Q.
    mask_scaled = additive_mask.astype(jnp.float32) * temp

    if compute_dtype is None:
        compute_dtype = queries.dtype
    out_dtype = queries.dtype

    # Free reshapes only (merge trailing head/feature dims): each grid step
    # DMAs contiguous (L, H*E)/(S, H*E)/(S, H*D) slabs — no HBM transposes.
    q = queries.astype(compute_dtype).reshape(B, N, L, H * E)
    k = keys.astype(compute_dtype).reshape(B, N, S, H * E)
    v = values.astype(compute_dtype).reshape(B, N, S, H * D)

    kernel = functools.partial(
        _st_full_attention_kernel, num_heads=H, e_dim=E, d_dim=D,
        softmax_temp=temp, approx_reciprocal=approx_reciprocal)

    comp_isize = jnp.dtype(compute_dtype).itemsize
    cost = pl.CostEstimate(
        flops=2 * B * N * H * L * S * (E + D),
        transcendentals=B * N * H * L * S,
        bytes_accessed=(q.size + k.size + v.size) * comp_isize
        + B * N * L * H * D * jnp.dtype(out_dtype).itemsize
        + mask_scaled.size * 4,
    )

    out = pl.pallas_call(
        kernel,
        out_shape=jax.ShapeDtypeStruct((B, N, L, H * D), out_dtype),
        grid=(B, N),
        in_specs=[
            pl.BlockSpec((pl.Squeezed(), pl.Squeezed(), L, H * E),
                         lambda b, n: (b, n, 0, 0)),
            pl.BlockSpec((pl.Squeezed(), pl.Squeezed(), S, H * E),
                         lambda b, n: (b, n, 0, 0)),
            pl.BlockSpec((pl.Squeezed(), pl.Squeezed(), S, H * D),
                         lambda b, n: (b, n, 0, 0)),
            pl.BlockSpec((L, S), lambda b, n: (0, 0)),
        ],
        out_specs=pl.BlockSpec((pl.Squeezed(), pl.Squeezed(), L, H * D),
                               lambda b, n: (b, n, 0, 0)),
        compiler_params=pltpu.CompilerParams(
            dimension_semantics=("parallel", "parallel"),
            vmem_limit_bytes=_vmem_limit_bytes(),
        ),
        cost_estimate=cost,
    )(q, k, v, mask_scaled)

    # Free split of the trailing dim back to per-head layout.
    return out.reshape(B, N, L, H, D)


def _reference(queries, keys, values, additive_mask, softmax_temp=None):
    B, N, L, H, E = queries.shape
    temp = softmax_temp if softmax_temp is not None else 1.0 / sqrt(E)
    qk = jnp.einsum("bnlhe,bnshe->bnhls",
                    queries.astype(jnp.float32), keys.astype(jnp.float32))
    qk = qk + additive_mask.astype(jnp.float32)   # (L,S) broadcast
    a = jax.nn.softmax(temp * qk, axis=-1)
    return jnp.einsum("bnhls,bnshd->bnlhd", a, values.astype(jnp.float32))


if __name__ == "__main__":
    # Small shapes consistent with the module's forward.
    B, N, L, S, H, E, D = 2, 2, 8, 8, 2, 32, 32

    key = jax.random.PRNGKey(0)
    kq, kk, kv = jax.random.split(key, 3)
    queries = jax.random.normal(kq, (B, N, L, H, E), dtype=jnp.float32)
    keys = jax.random.normal(kk, (B, N, S, H, E), dtype=jnp.float32)
    values = jax.random.normal(kv, (B, N, S, H, D), dtype=jnp.float32)

    # attn_mask.additive_matrix: causal additive mask (L, S); large finite
    # negative instead of -inf keeps the softmax well defined on masked lanes.
    causal = jnp.tril(jnp.ones((L, S), dtype=jnp.float32))
    additive_mask = jnp.where(causal > 0, 0.0, -1e9).astype(jnp.float32)

    # f32 compute path: tight check (only the approx reciprocal differs).
    out_f32 = st_full_attention(queries, keys, values, additive_mask,
                                compute_dtype=jnp.float32)
    out_f32 = jax.block_until_ready(out_f32)
    ref = _reference(queries, keys, values, additive_mask)
    assert out_f32.shape == (B, N, L, H, D), out_f32.shape
    assert jnp.allclose(out_f32, ref, atol=1e-2, rtol=1e-2), float(
        jnp.max(jnp.abs(out_f32 - ref)))

    # Default bf16 compute path (halves HBM traffic, native MXU rate):
    # compare against a reference fed the same bf16-rounded inputs.
    out_bf16 = st_full_attention(queries, keys, values, additive_mask)
    out_bf16 = jax.block_until_ready(out_bf16)
    ref_bf16 = _reference(queries.astype(jnp.bfloat16),
                          keys.astype(jnp.bfloat16),
                          values.astype(jnp.bfloat16), additive_mask)
    assert out_bf16.shape == (B, N, L, H, D), out_bf16.shape
    assert jnp.allclose(out_bf16, ref_bf16, atol=7.5e-2, rtol=7.5e-2), float(
        jnp.max(jnp.abs(out_bf16 - ref_bf16)))

    print("KERNEL_OK")
</pallas_src>

<mosaic_0001>
module attributes {stable_mosaic.version = 11 : i64} {
  func.func @_st_full_attention_kernel(%arg0: i32, %arg1: i32, %arg2: memref<1x1x8x64xf32, #tpu.memory_space<vmem>>, %arg3: memref<1x1x8x64xf32, #tpu.memory_space<vmem>>, %arg4: memref<1x1x8x64xf32, #tpu.memory_space<vmem>>, %arg5: memref<8x8xf32, #tpu.memory_space<vmem>>, %arg6: memref<1x1x8x64xf32, #tpu.memory_space<vmem>>) attributes {dimension_semantics = [#tpu.dimension_semantics<parallel>, #tpu.dimension_semantics<parallel>], iteration_bounds = array<i64: 2, 2>, scalar_prefetch = 0 : i64, scratch_operands = 0 : i64, tpu.core_type = #tpu.core_type<tc>, window_params = [{transform_indices = @transform_0, window_bounds = array<i64: 1, 1, 8, 64>}, {transform_indices = @transform_1, window_bounds = array<i64: 1, 1, 8, 64>}, {transform_indices = @transform_2, window_bounds = array<i64: 1, 1, 8, 64>}, {pipeline_mode = #tpu.pipeline_mode<synchronous>, transform_indices = @transform_3, window_bounds = array<i64: 8, 8>}, {transform_indices = @transform_4, window_bounds = array<i64: 1, 1, 8, 64>}]} {
    %c0 = arith.constant 0 : index
    %c0_0 = arith.constant 0 : index
    %0 = vector.load %arg5[%c0, %c0_0] : memref<8x8xf32, #tpu.memory_space<vmem>>, vector<8x8xf32>
    %c0_1 = arith.constant 0 : index
    %c0_2 = arith.constant 0 : index
    %c0_3 = arith.constant 0 : index
    %c0_4 = arith.constant 0 : index
    %1 = vector.load %arg2[%c0_1, %c0_2, %c0_3, %c0_4] : memref<1x1x8x64xf32, #tpu.memory_space<vmem>>, vector<1x1x8x32xf32>
    %2 = vector.shape_cast %1 : vector<1x1x8x32xf32> to vector<8x32xf32>
    %cst = arith.constant 0.176776692 : f32
    %3 = vector.broadcast %cst : f32 to vector<8x32xf32>
    %4 = arith.mulf %2, %3 : vector<8x32xf32>
    %c0_5 = arith.constant 0 : index
    %c0_6 = arith.constant 0 : index
    %c0_7 = arith.constant 0 : index
    %c0_8 = arith.constant 0 : index
    %5 = vector.load %arg3[%c0_5, %c0_6, %c0_7, %c0_8] : memref<1x1x8x64xf32, #tpu.memory_space<vmem>>, vector<1x1x8x32xf32>
    %6 = vector.shape_cast %5 : vector<1x1x8x32xf32> to vector<8x32xf32>
    %c0_9 = arith.constant 0 : index
    %c0_10 = arith.constant 0 : index
    %c0_11 = arith.constant 0 : index
    %c0_12 = arith.constant 0 : index
    %7 = vector.load %arg4[%c0_9, %c0_10, %c0_11, %c0_12] : memref<1x1x8x64xf32, #tpu.memory_space<vmem>>, vector<1x1x8x32xf32>
    %8 = vector.shape_cast %7 : vector<1x1x8x32xf32> to vector<8x32xf32>
    "tpu.trace_start"() <{level = 10 : i32, message = "le,se->ls"}> : () -> ()
    %cst_13 = arith.constant dense<0.000000e+00> : vector<8x8xf32>
    %9 = tpu.matmul %4, %6, %cst_13 {dimension_numbers = #tpu.dot_dimension_numbers<[1], [1], [0], [0], [0, 0, 1, 0], [], []>} : vector<8x32xf32>, vector<8x32xf32>, vector<8x8xf32> -> vector<8x8xf32>
    "tpu.trace_stop"() : () -> ()
    %10 = arith.addf %9, %0 : vector<8x8xf32>
    %cst_14 = arith.constant dense<0xFF800000> : vector<8xf32>
    %11 = vector.multi_reduction <maximumf>, %10, %cst_14 [1] : vector<8x8xf32> to vector<8xf32>
    %12 = vector.shape_cast %11 : vector<8xf32> to vector<8x1xf32>
    %13 = vector.broadcast %12 : vector<8x1xf32> to vector<8x8xf32>
    %14 = arith.subf %10, %13 : vector<8x8xf32>
    %15 = math.exp %14 : vector<8x8xf32>
    %cst_15 = arith.constant dense<0.000000e+00> : vector<8xf32>
    %16 = vector.multi_reduction <add>, %15, %cst_15 [1] : vector<8x8xf32> to vector<8xf32>
    %17 = vector.shape_cast %16 : vector<8xf32> to vector<8x1xf32>
    "tpu.trace_start"() <{level = 10 : i32, message = "ls,sd->ld"}> : () -> ()
    %cst_16 = arith.constant dense<0.000000e+00> : vector<8x32xf32>
    %18 = tpu.matmul %15, %8, %cst_16 {dimension_numbers = #tpu.dot_dimension_numbers<[1], [0], [0], [1], [0, 0, 1, 1], [], []>} : vector<8x8xf32>, vector<8x32xf32>, vector<8x32xf32> -> vector<8x32xf32>
    "tpu.trace_stop"() : () -> ()
    %19 = tpu.reciprocal %17 {approx = true} : vector<8x1xf32> -> vector<8x1xf32>
    %20 = vector.broadcast %19 : vector<8x1xf32> to vector<8x32xf32>
    %21 = arith.mulf %18, %20 : vector<8x32xf32>
    %c0_17 = arith.constant 0 : index
    %c0_18 = arith.constant 0 : index
    %c0_19 = arith.constant 0 : index
    %c0_20 = arith.constant 0 : index
    %22 = vector.load %arg6[%c0_17, %c0_18, %c0_19, %c0_20] : memref<1x1x8x64xf32, #tpu.memory_space<vmem>>, vector<1x1x8x32xf32>
    %23 = vector.shape_cast %22 : vector<1x1x8x32xf32> to vector<8x32xf32>
    %24 = vector.shape_cast %21 : vector<8x32xf32> to vector<1x1x8x32xf32>
    tpu.vector_store %arg6[%c0_17, %c0_18, %c0_19, %c0_20], %24 {strides = array<i32>} : memref<1x1x8x64xf32, #tpu.memory_space<vmem>>, vector<1x1x8x32xf32>,
    %c0_21 = arith.constant 0 : index
    %c0_22 = arith.constant 0 : index
    %c0_23 = arith.constant 0 : index
    %c32 = arith.constant 32 : index
    %25 = vector.load %arg2[%c0_21, %c0_22, %c0_23, %c32] : memref<1x1x8x64xf32, #tpu.memory_space<vmem>>, vector<1x1x8x32xf32>
    %26 = vector.shape_cast %25 : vector<1x1x8x32xf32> to vector<8x32xf32>
    %cst_24 = arith.constant 0.176776692 : f32
    %27 = vector.broadcast %cst_24 : f32 to vector<8x32xf32>
    %28 = arith.mulf %26, %27 : vector<8x32xf32>
    %c0_25 = arith.constant 0 : index
    %c0_26 = arith.constant 0 : index
    %c0_27 = arith.constant 0 : index
    %c32_28 = arith.constant 32 : index
    %29 = vector.load %arg3[%c0_25, %c0_26, %c0_27, %c32_28] : memref<1x1x8x64xf32, #tpu.memory_space<vmem>>, vector<1x1x8x32xf32>
    %30 = vector.shape_cast %29 : vector<1x1x8x32xf32> to vector<8x32xf32>
    %c0_29 = arith.constant 0 : index
    %c0_30 = arith.constant 0 : index
    %c0_31 = arith.constant 0 : index
    %c32_32 = arith.constant 32 : index
    %31 = vector.load %arg4[%c0_29, %c0_30, %c0_31, %c32_32] : memref<1x1x8x64xf32, #tpu.memory_space<vmem>>, vector<1x1x8x32xf32>
    %32 = vector.shape_cast %31 : vector<1x1x8x32xf32> to vector<8x32xf32>
    "tpu.trace_start"() <{level = 10 : i32, message = "le,se->ls"}> : () -> ()
    %cst_33 = arith.constant dense<0.000000e+00> : vector<8x8xf32>
    %33 = tpu.matmul %28, %30, %cst_33 {dimension_numbers = #tpu.dot_dimension_numbers<[1], [1], [0], [0], [0, 0, 1, 0], [], []>} : vector<8x32xf32>, vector<8x32xf32>, vector<8x8xf32> -> vector<8x8xf32>
    "tpu.trace_stop"() : () -> ()
    %34 = arith.addf %33, %0 : vector<8x8xf32>
    %cst_34 = arith.constant dense<0xFF800000> : vector<8xf32>
    %35 = vector.multi_reduction <maximumf>, %34, %cst_34 [1] : vector<8x8xf32> to vector<8xf32>
    %36 = vector.shape_cast %35 : vector<8xf32> to vector<8x1xf32>
    %37 = vector.broadcast %36 : vector<8x1xf32> to vector<8x8xf32>
    %38 = arith.subf %34, %37 : vector<8x8xf32>
    %39 = math.exp %38 : vector<8x8xf32>
    %cst_35 = arith.constant dense<0.000000e+00> : vector<8xf32>
    %40 = vector.multi_reduction <add>, %39, %cst_35 [1] : vector<8x8xf32> to vector<8xf32>
    %41 = vector.shape_cast %40 : vector<8xf32> to vector<8x1xf32>
    "tpu.trace_start"() <{level = 10 : i32, message = "ls,sd->ld"}> : () -> ()
    %cst_36 = arith.constant dense<0.000000e+00> : vector<8x32xf32>
    %42 = tpu.matmul %39, %32, %cst_36 {dimension_numbers = #tpu.dot_dimension_numbers<[1], [0], [0], [1], [0, 0, 1, 1], [], []>} : vector<8x8xf32>, vector<8x32xf32>, vector<8x32xf32> -> vector<8x32xf32>
    "tpu.trace_stop"() : () -> ()
    %43 = tpu.reciprocal %41 {approx = true} : vector<8x1xf32> -> vector<8x1xf32>
    %44 = vector.broadcast %43 : vector<8x1xf32> to vector<8x32xf32>
    %45 = arith.mulf %42, %44 : vector<8x32xf32>
    %c0_37 = arith.constant 0 : index
    %c0_38 = arith.constant 0 : index
    %c0_39 = arith.constant 0 : index
    %c32_40 = arith.constant 32 : index
    %46 = vector.load %arg6[%c0_37, %c0_38, %c0_39, %c32_40] : memref<1x1x8x64xf32, #tpu.memory_space<vmem>>, vector<1x1x8x32xf32>
    %47 = vector.shape_cast %46 : vector<1x1x8x32xf32> to vector<8x32xf32>
    %48 = vector.shape_cast %45 : vector<8x32xf32> to vector<1x1x8x32xf32>
    tpu.vector_store %arg6[%c0_37, %c0_38, %c0_39, %c32_40], %48 {strides = array<i32>} : memref<1x1x8x64xf32, #tpu.memory_space<vmem>>, vector<1x1x8x32xf32>,
    return
  }
  func.func @transform_0(%arg0: i32, %arg1: i32) -> (i32, i32, i32, i32) {
    %c0_i32 = arith.constant 0 : i32
    %c0_i32_0 = arith.constant 0 : i32
    %c0_i32_1 = arith.constant 0 : i32
    return %arg0, %arg1, %c0_i32, %c0_i32_0 : i32, i32, i32, i32
  }
  func.func @transform_1(%arg0: i32, %arg1: i32) -> (i32, i32, i32, i32) {
    %c0_i32 = arith.constant 0 : i32
    %c0_i32_0 = arith.constant 0 : i32
    %c0_i32_1 = arith.constant 0 : i32
    return %arg0, %arg1, %c0_i32, %c0_i32_0 : i32, i32, i32, i32
  }
  func.func @transform_2(%arg0: i32, %arg1: i32) -> (i32, i32, i32, i32) {
    %c0_i32 = arith.constant 0 : i32
    %c0_i32_0 = arith.constant 0 : i32
    %c0_i32_1 = arith.constant 0 : i32
    return %arg0, %arg1, %c0_i32, %c0_i32_0 : i32, i32, i32, i32
  }
  func.func @transform_3(%arg0: i32, %arg1: i32) -> (i32, i32) {
    %c0_i32 = arith.constant 0 : i32
    %c0_i32_0 = arith.constant 0 : i32
    %c0_i32_1 = arith.constant 0 : i32
    return %c0_i32, %c0_i32_0 : i32, i32
  }
  func.func @transform_4(%arg0: i32, %arg1: i32) -> (i32, i32, i32, i32) {
    %c0_i32 = arith.constant 0 : i32
    %c0_i32_0 = arith.constant 0 : i32
    %c0_i32_1 = arith.constant 0 : i32
    return %arg0, %arg1, %c0_i32, %c0_i32_0 : i32, i32, i32, i32
  }
}

</mosaic_0001>

<llo_original>
// kernel: tpu_custom_call.1
$region0: #{tpu_custom_call.1}
  #allocation0 [shape = 'u32[]', space=smem, size = 0x4, offset = 0x4, fixed_abs, tag = 'smem constant byte address 0x4 - core index']
  #allocation1 [shape = 'u32[144,128]{1,0:T(1,128)}', space=vmem, size = 0x12000, scoped, tag = 'internal scratch']
  %s0 = inlined_call_operand.hbm [shape: f32[2,2,8,64], index: 0, kind: input, shape index: {}]
  %s1 = inlined_call_operand.hbm [shape: f32[2,2,8,64], index: 1, kind: input, shape index: {}]
  %s2 = inlined_call_operand.hbm [shape: f32[2,2,8,64], index: 2, kind: input, shape index: {}]
  %s3 = inlined_call_operand.vmem [shape: f32[8,8], index: 3, kind: input, shape index: {}]
  %s4 = inlined_call_operand.hbm [shape: f32[2,2,8,64], index: 4, kind: output, shape index: {}]
  %s5 = sld [smem:[#allocation0]]
  $region61: #{tpu_custom_call.1} parent=0
    _
  %s7 = ssub.s32 1, %s5
  %s8 = scalar_select 0, %s7, %s5
  $region1: #{tpu_custom_call.1} parent=0
    #allocation2 [shape = 'u8[8192]{0}', space=vmem, size = 0x2000, scoped, tag = 'input window, operand 0']
    #allocation3 [shape = 's32[2]{0}', space=sflag, size = 0x8, scoped, tag = 'scoped memory for tpu_custom_call.1']
    #allocation4 [shape = 's32[2]{0}', space=sflag, size = 0x8, scoped, tag = 'scoped memory for tpu_custom_call.1']
    #allocation5 [shape = 'u8[8192]{0}', space=vmem, size = 0x2000, scoped, tag = 'input window, operand 1']
    #allocation6 [shape = 's32[2]{0}', space=sflag, size = 0x8, scoped, tag = 'scoped memory for tpu_custom_call.1']
    #allocation7 [shape = 'u8[8192]{0}', space=vmem, size = 0x2000, scoped, tag = 'input window, operand 2']
    #allocation8 [shape = 'u8[8192]{0}', space=vmem, size = 0x2000, scoped, tag = 'output window, operand 0']
    %9 = vsyncpa [#allocation3], 0
    %s10 = scalar_lea.sflag [#allocation3], 1
    %11 = vsyncpa %s10, 0
    %12 = vsyncpa [#allocation6], 0
    %s13 = scalar_lea.sflag [#allocation6], 1
    %14 = vsyncpa %s13, 0
    %15 = vsyncpa [#allocation4], 0
    %s16 = scalar_lea.sflag [#allocation4], 1
    %17 = vsyncpa %s16, 0
    loop: start=0, step=1, limit=6
    $region2: #{tpu_custom_call.1} parent=1 // loop_pre_header
      _
    $region3: #{tpu_custom_call.1} parent=1 // loop_header
      %s19 = sphi 0, %s23
      %p20 = scmp.ge.s32.totalorder %s19, 6
      %s26 = sphi 0, %s38
      %s27 = sphi 0, %s34
      %s28 = sphi 0, %s26
      %s29 = sphi 0, %s27
      %s30 = sphi 0, %s28
      %s31 = sphi 0, %s29
      %s43 = sphi 0, %s45
      %s46 = sphi 0, %s43
      %s47 = sphi 0, %s46
      %s63 = sphi 0, %s47
      %s71 = sphi 0, %s73
      %s74 = sphi 0, %s71
      %s75 = sphi 0, %s74
      %s91 = sphi 0, %s75
      %s99 = sphi 0, %s101
      %s102 = sphi 0, %s99
      %s103 = sphi 0, %s102
      %s119 = sphi 0, %s103
      %s123 = sphi 0, %s123
      %s125 = sphi 0, %s123
      %s126 = sphi 0, %s125
      %s140 = sphi 0, %s126
      %s148 = sphi 0, %s150
      %s151 = sphi 0, %s148
      %s152 = sphi 0, %s151
      %s168 = sphi 0, %s152
    $region4: #{tpu_custom_call.1} parent=1 // loop_header_branch
      %22 = sbr.rel (%p20) target = $region8
    $region5: #{tpu_custom_call.1} parent=1 // loop_body
      %s24 = ssub.s32 %s19, 1
      %s25 = ssub.s32 %s19, 2
      %s32 = sadd.s32 1, %s27
      %p33 = scmp.ge.s32.totalorder %s32, 2
      %s34 = scalar_select %p33, 0, %s32
      %s35 = sadd.s32 1, %s26
      %s36 = scalar_select %p33, %s35, %s26
      %p37 = scmp.ge.s32.totalorder %s36, 2
      %s38 = scalar_select %p37, 0, %s36
      %s39 = ssub.s32 %s26, %s38
      %s40 = ssub.s32 %s27, %s34
      %s41 = sor.u32 %s39, %s40
      %p42 = scmp.eq.s32.totalorder %s41, 0
      %s44 = sadd.s32 %s43, 1
      %s45 = scalar_select %p42, %s43, %s44
      %p48 = pneg %p42
      %p49 = scmp.eq.s32.totalorder %s19, 3
      %p50 = por %p48, %p49
      %p51 = scmp.ne.s32.totalorder %s43, %s46
      %p52 = scmp.eq.s32.totalorder %s19, 0
      %p53 = por %p51, %p52
      %p54 = scmp.ne.s32.totalorder %s43, %s46
      %p55 = scmp.eq.s32.totalorder %s24, 3
      %p56 = por %p54, %p55
      %p57 = scmp.ne.s32.totalorder %s46, %s47
      %p58 = scmp.eq.s32.totalorder %s24, 0
      %p59 = por %p57, %p58
      %p60 = scmp.ne.s32.totalorder %s46, %s47
      %p61 = scmp.eq.s32.totalorder %s25, 3
      %p62 = por %p60, %p61
      %p64 = scmp.ne.s32.totalorder %s47, %s63
      %p65 = scmp.eq.s32.totalorder %s25, 0
      %p66 = por %p64, %p65
      %s67 = ssub.s32 %s26, %s38
      %s68 = ssub.s32 %s27, %s34
      %s69 = sor.u32 %s67, %s68
      %p70 = scmp.eq.s32.totalorder %s69, 0
      %s72 = sadd.s32 %s71, 1
      %s73 = scalar_select %p70, %s71, %s72
      %p76 = pneg %p70
      %p77 = scmp.eq.s32.totalorder %s19, 3
      %p78 = por %p76, %p77
      %p79 = scmp.ne.s32.totalorder %s71, %s74
      %p80 = scmp.eq.s32.totalorder %s19, 0
      %p81 = por %p79, %p80
      %p82 = scmp.ne.s32.totalorder %s71, %s74
      %p83 = scmp.eq.s32.totalorder %s24, 3
      %p84 = por %p82, %p83
      %p85 = scmp.ne.s32.totalorder %s74, %s75
      %p86 = scmp.eq.s32.totalorder %s24, 0
      %p87 = por %p85, %p86
      %p88 = scmp.ne.s32.totalorder %s74, %s75
      %p89 = scmp.eq.s32.totalorder %s25, 3
      %p90 = por %p88, %p89
      %p92 = scmp.ne.s32.totalorder %s75, %s91
      %p93 = scmp.eq.s32.totalorder %s25, 0
      %p94 = por %p92, %p93
      %s95 = ssub.s32 %s26, %s38
      %s96 = ssub.s32 %s27, %s34
      %s97 = sor.u32 %s95, %s96
      %p98 = scmp.eq.s32.totalorder %s97, 0
      %s100 = sadd.s32 %s99, 1
      %s101 = scalar_select %p98, %s99, %s100
      %p104 = pneg %p98
      %p105 = scmp.eq.s32.totalorder %s19, 3
      %p106 = por %p104, %p105
      %p107 = scmp.ne.s32.totalorder %s99, %s102
      %p108 = scmp.eq.s32.totalorder %s19, 0
      %p109 = por %p107, %p108
      %p110 = scmp.ne.s32.totalorder %s99, %s102
      %p111 = scmp.eq.s32.totalorder %s24, 3
      %p112 = por %p110, %p111
      %p113 = scmp.ne.s32.totalorder %s102, %s103
      %p114 = scmp.eq.s32.totalorder %s24, 0
      %p115 = por %p113, %p114
      %p116 = scmp.ne.s32.totalorder %s102, %s103
      %p117 = scmp.eq.s32.totalorder %s25, 3
      %p118 = por %p116, %p117
      %p120 = scmp.ne.s32.totalorder %s103, %s119
      %p121 = scmp.eq.s32.totalorder %s25, 0
      %p122 = por %p120, %p121
      %s124 = sadd.s32 %s123, 1
      %p127 = scmp.eq.s32.totalorder %s19, 3
      %p128 = scmp.ne.s32.totalorder %s123, %s125
      %p129 = scmp.eq.s32.totalorder %s19, 0
      %p130 = por %p128, %p129
      %p131 = scmp.ne.s32.totalorder %s123, %s125
      %p132 = scmp.eq.s32.totalorder %s24, 3
      %p133 = por %p131, %p132
      %p134 = scmp.ne.s32.totalorder %s125, %s126
      %p135 = scmp.eq.s32.totalorder %s24, 0
      %p136 = por %p134, %p135
      %p137 = scmp.ne.s32.totalorder %s125, %s126
      %p138 = scmp.eq.s32.totalorder %s25, 3
      %p139 = por %p137, %p138
      %p141 = scmp.ne.s32.totalorder %s126, %s140
      %p142 = scmp.eq.s32.totalorder %s25, 0
      %p143 = por %p141, %p142
      %s144 = ssub.s32 %s26, %s38
      %s145 = ssub.s32 %s27, %s34
      %s146 = sor.u32 %s144, %s145
      %p147 = scmp.eq.s32.totalorder %s146, 0
      %s149 = sadd.s32 %s148, 1
      %s150 = scalar_select %p147, %s148, %s149
      %p153 = pneg %p147
      %p154 = scmp.eq.s32.totalorder %s19, 3
      %p155 = por %p153, %p154
      %p156 = scmp.ne.s32.totalorder %s148, %s151
      %p157 = scmp.eq.s32.totalorder %s19, 0
      %p158 = por %p156, %p157
      %p159 = scmp.ne.s32.totalorder %s148, %s151
      %p160 = scmp.eq.s32.totalorder %s24, 3
      %p161 = por %p159, %p160
      %p162 = scmp.ne.s32.totalorder %s151, %s152
      %p163 = scmp.eq.s32.totalorder %s24, 0
      %p164 = por %p162, %p163
      %p165 = scmp.ne.s32.totalorder %s151, %s152
      %p166 = scmp.eq.s32.totalorder %s25, 3
      %p167 = por %p165, %p166
      %p169 = scmp.ne.s32.totalorder %s152, %s168
      %p170 = scmp.eq.s32.totalorder %s25, 0
      %p171 = por %p169, %p170
      %p172 = scmp.le.s32.totalorder 1, %s19
      %p173 = scmp.lt.s32.totalorder %s19, 5
      %p174 = pnand %p172, %p173
      %p175 = pneg %p174
      // Predicated region
      $region9: #{tpu_custom_call.1} parent=5 // pred_check
        _
      $region10: #{tpu_custom_call.1} parent=5 // pred_check_branch
        %177 = sbr.rel (%p174) target = $region12
      $region11: #{tpu_custom_call.1} parent=5 // pred_region
        %s178 = ssub.s32 %s19, 1
        // Predicated region
        $region13: #{tpu_custom_call.1} parent=11 // pred_check
          %p179 = pneg %p136
        $region14: #{tpu_custom_call.1} parent=11 // pred_check_branch
          %181 = sbr.rel (%p179) target = $region16
        $region15: #{tpu_custom_call.1} parent=11 // pred_region
          _
        $region16: #{tpu_custom_call.1} parent=11 // pred_fallthru
          _
      $region12: #{tpu_custom_call.1} parent=5 // pred_fallthru
        _
      %p182 = scmp.lt.s32.totalorder %s19, 4
      // Predicated region
      $region17: #{tpu_custom_call.1} parent=5 // pred_check
        %p183 = pneg %p182
      $region18: #{tpu_custom_call.1} parent=5 // pred_check_branch
        %185 = sbr.rel (%p183) target = $region20
      $region19: #{tpu_custom_call.1} parent=5 // pred_region
        // Predicated region
        $region21: #{tpu_custom_call.1} parent=19 // pred_check
          %p186 = pneg %p53
        $region22: #{tpu_custom_call.1} parent=19 // pred_check_branch
          %188 = sbr.rel (%p186) target = $region24
        $region23: #{tpu_custom_call.1} parent=19 // pred_region
          %s189 = sand.u32 %s43, 1
          %s190 = scalar_lea.sflag [#allocation3], %s189
          %s191 = sand.u32 %s43, 1
          %s192 = smul.addr %s191, 8
          %s193 = scalar_lea.vmem [#allocation2], %s192
          %s195 = ssub.s32 128, 128
          %196 = vsyncadd %s190, %s195
          %s197 = smul.addr %s26, 2
          %s198 = sadd.s32 %s27, %s197
          %s199 = smul.addr %s198, 128
          %s200 = scalar_lea.hbm %s0, %s199
          %s202 = sshll.u32 %s193, 4
          %s203 = int_to_ptr.vmem [resolvable:$true] %s202
          %205 = dma.hbm_to_vmem [thread:$0]  %s200, 128, %s203, %s190
        $region24: #{tpu_custom_call.1} parent=19 // pred_fallthru
          _
        // Predicated region
        $region25: #{tpu_custom_call.1} parent=19 // pred_check
          %p206 = pneg %p81
        $region26: #{tpu_custom_call.1} parent=19 // pred_check_branch
          %208 = sbr.rel (%p206) target = $region28
        $region27: #{tpu_custom_call.1} parent=19 // pred_region
          %s209 = sand.u32 %s19, 1
          %s210 = scalar_lea.sflag [#allocation6], %s209
          %s211 = sand.u32 %s71, 1
          %s212 = smul.addr %s211, 8
          %s213 = scalar_lea.vmem [#allocation5], %s212
          %s215 = ssub.s32 128, 128
          %216 = vsyncadd %s210, %s215
          %s217 = smul.addr %s26, 2
          %s218 = sadd.s32 %s27, %s217
          %s219 = smul.addr %s218, 128
          %s220 = scalar_lea.hbm %s1, %s219
          %s222 = sshll.u32 %s213, 4
          %s223 = int_to_ptr.vmem [resolvable:$true] %s222
          %225 = dma.hbm_to_vmem [thread:$0]  %s220, 128, %s223, %s210
        $region28: #{tpu_custom_call.1} parent=19 // pred_fallthru
          _
        // Predicated region
        $region29: #{tpu_custom_call.1} parent=19 // pred_check
          %p226 = pneg %p109
        $region30: #{tpu_custom_call.1} parent=19 // pred_check_branch
          %228 = sbr.rel (%p226) target = $region32
        $region31: #{tpu_custom_call.1} parent=19 // pred_region
          %s229 = sand.u32 %s19, 1
          %s230 = scalar_lea.sflag [#allocation6], %s229
          %s231 = sand.u32 %s99, 1
          %s232 = smul.addr %s231, 8
          %s233 = scalar_lea.vmem [#allocation7], %s232
          %s235 = ssub.s32 128, 128
          %236 = vsyncadd %s230, %s235
          %s237 = smul.addr %s26, 2
          %s238 = sadd.s32 %s27, %s237
          %s239 = smul.addr %s238, 128
          %s240 = scalar_lea.hbm %s2, %s239
          %s242 = sshll.u32 %s233, 4
          %s243 = int_to_ptr.vmem [resolvable:$true] %s242
          %245 = dma.hbm_to_vmem [thread:$0]  %s240, 128, %s243, %s230
        $region32: #{tpu_custom_call.1} parent=19 // pred_fallthru
          _
      $region20: #{tpu_custom_call.1} parent=5 // pred_fallthru
        _
      %p246 = scmp.le.s32.totalorder 1, %s19
      %p247 = scmp.lt.s32.totalorder %s19, 5
      %p248 = pnand %p246, %p247
      %p249 = pneg %p248
      // Predicated region
      $region33: #{tpu_custom_call.1} parent=5 // pred_check
        _
      $region34: #{tpu_custom_call.1} parent=5 // pred_check_branch
        %251 = sbr.rel (%p248) target = $region36
      $region35: #{tpu_custom_call.1} parent=5 // pred_region
        %s252 = ssub.s32 %s19, 1
        %s253 = sand.u32 %s46, 1
        %s254 = scalar_lea.sflag [#allocation3], %s253
        %s255 = sand.u32 %s46, 1
        %s256 = smul.addr %s255, 8
        %s257 = scalar_lea.vmem [#allocation2], %s256
        // Predicated region
        $region37: #{tpu_custom_call.1} parent=35 // pred_check
          %p258 = pneg %p59
        $region38: #{tpu_custom_call.1} parent=35 // pred_check_branch
          %260 = sbr.rel (%p258) target = $region40
        $region39: #{tpu_custom_call.1} parent=35 // pred_region
          %261 = dma.done %s254, 128
        $region40: #{tpu_custom_call.1} parent=35 // pred_fallthru
          _
        %s262 = sand.u32 %s24, 1
        %s263 = scalar_lea.sflag [#allocation6], %s262
        %s264 = sand.u32 %s74, 1
        %s265 = smul.addr %s264, 8
        %s266 = scalar_lea.vmem [#allocation5], %s265
        // Predicated region
        $region41: #{tpu_custom_call.1} parent=35 // pred_check
          %p267 = pneg %p87
        $region42: #{tpu_custom_call.1} parent=35 // pred_check_branch
          %269 = sbr.rel (%p267) target = $region44
        $region43: #{tpu_custom_call.1} parent=35 // pred_region
          %270 = dma.done %s263, 128
        $region44: #{tpu_custom_call.1} parent=35 // pred_fallthru
          _
        %s271 = sand.u32 %s24, 1
        %s272 = scalar_lea.sflag [#allocation6], %s271
        %s273 = sand.u32 %s102, 1
        %s274 = smul.addr %s273, 8
        %s275 = scalar_lea.vmem [#allocation7], %s274
        // Predicated region
        $region45: #{tpu_custom_call.1} parent=35 // pred_check
          %p276 = pneg %p115
        $region46: #{tpu_custom_call.1} parent=35 // pred_check_branch
          %278 = sbr.rel (%p276) target = $region48
        $region47: #{tpu_custom_call.1} parent=35 // pred_region
          %279 = dma.done %s272, 128
        $region48: #{tpu_custom_call.1} parent=35 // pred_fallthru
          _
        %s280 = sand.u32 %s46, 1
        %s281 = scalar_lea.sflag [#allocation3], %s280
        %s282 = sand.u32 %s46, 1
        %s283 = smul.addr %s282, 8
        %s284 = scalar_lea.vmem [#allocation2], %s283
        %p285 = pneg %p59
        %p286 = pneg %p56
        %s287 = sand.u32 %s24, 1
        %s288 = scalar_lea.sflag [#allocation6], %s287
        %s289 = sand.u32 %s74, 1
        %s290 = smul.addr %s289, 8
        %s291 = scalar_lea.vmem [#allocation5], %s290
        %p292 = pneg %p87
        %p293 = pneg %p84
        %s294 = sand.u32 %s24, 1
        %s295 = scalar_lea.sflag [#allocation6], %s294
        %s296 = sand.u32 %s102, 1
        %s297 = smul.addr %s296, 8
        %s298 = scalar_lea.vmem [#allocation7], %s297
        %p299 = pneg %p115
        %p300 = pneg %p112
        %p301 = pneg %p136
        %p302 = pneg %p133
        %p303 = pneg %p164
        %p304 = pneg %p161
        %s305 = sand.u32 %s151, 1
        %s306 = scalar_lea.sflag [#allocation4], %s305
        %s307 = sand.u32 %s151, 1
        %s308 = smul.addr %s307, 8
        %s309 = scalar_lea.vmem [#allocation8], %s308
        %v310 = vld [vmem:[%s3] sm:$0xff]
        %v311 = vld [vmem:[%s257] sm:$0xff]
        %v312 = vmul.f32 %v311, 0.17677669
        %v313 = vld [vmem:[%s266] sm:$0xff]
        %v314 = vld [vmem:[%s275] sm:$0xff]
        %vm315 = vcmask 261120
        %v317 = vsel %vm315, %v312, 0
        %v320 = vsel %vm315, %v313, 0
        %322 = vmatprep.subr.mxu0 0.0
        %323 = vmatpush1.xpose.msra.mxu0 %v320
        %324 = vmatprep.subr.mxu0 0.0
        %325 = vmatpush1.xpose.msra.mxu0 0.0
        %326 = vmatprep.subr.mxu0 0.0
        %327 = vmatpush1.xpose.msra.mxu0 0.0
        %328 = vmatprep.subr.mxu0 0.0
        %329 = vmatpush1.xpose.msra.mxu0 0.0
        %330 = vmatprep.subr.mxu0 0.0
        %331 = vmatpush1.xpose.msra.mxu0 0.0
        %332 = vmatprep.subr.mxu0 0.0
        %333 = vmatpush1.xpose.msra.mxu0 0.0
        %334 = vmatprep.subr.mxu0 0.0
        %335 = vmatpush1.xpose.msra.mxu0 0.0
        %336 = vmatprep.subr.mxu0 0.0
        %337 = vmatpush1.xpose.msra.mxu0 0.0
        %338 = vmatprep.subr.mxu0 0.0
        %339 = vmatpush1.xpose.msra.mxu0 0.0
        %340 = vmatprep.subr.mxu0 0.0
        %341 = vmatpush1.xpose.msra.mxu0 0.0
        %342 = vmatprep.subr.mxu0 0.0
        %343 = vmatpush1.xpose.msra.mxu0 0.0
        %344 = vmatprep.subr.mxu0 0.0
        %345 = vmatpush1.xpose.msra.mxu0 0.0
        %346 = vmatprep.subr.mxu0 0.0
        %347 = vmatpush1.xpose.msra.mxu0 0.0
        %348 = vmatprep.subr.mxu0 0.0
        %349 = vmatpush1.xpose.msra.mxu0 0.0
        %350 = vmatprep.subr.mxu0 0.0
        %351 = vmatpush1.xpose.msra.mxu0 0.0
        %352 = vmatprep.subr.mxu0 0.0
        %353 = vmatpush1.xpose.msra.mxu0 0.0
        %354 = vmatprep.subr.mxu0 0.0
        %355 = vmatpush1.xpose.msra.mxu0 0.0
        %356 = vmatprep.subr.mxu0 0.0
        %357 = vmatpush1.xpose.msra.mxu0 0.0
        %358 = vmatprep.subr.mxu0 0.0
        %359 = vmatpush1.xpose.msra.mxu0 0.0
        %360 = vmatprep.subr.mxu0 0.0
        %361 = vmatpush1.xpose.msra.mxu0 0.0
        %362 = vmatprep.subr.mxu0 0.0
        %363 = vmatpush1.xpose.msra.mxu0 0.0
        %364 = vmatprep.subr.mxu0 0.0
        %365 = vmatpush1.xpose.msra.mxu0 0.0
        %366 = vmatprep.subr.mxu0 0.0
        %367 = vmatpush1.xpose.msra.mxu0 0.0
        %368 = vmatprep.subr.mxu0 0.0
        %369 = vmatpush1.xpose.msra.mxu0 0.0
        %370 = vmatprep.subr.mxu0 0.0
        %371 = vmatpush1.xpose.msra.mxu0 0.0
        %372 = vmatprep.subr.mxu0 0.0
        %373 = vmatpush1.xpose.msra.mxu0 0.0
        %374 = vmatprep.subr.mxu0 0.0
        %375 = vmatpush1.xpose.msra.mxu0 0.0
        %376 = vmatprep.subr.mxu0 0.0
        %377 = vmatpush1.xpose.msra.mxu0 0.0
        %378 = vmatprep.subr.mxu0 0.0
        %379 = vmatpush1.xpose.msra.mxu0 0.0
        %380 = vmatprep.subr.mxu0 0.0
        %381 = vmatpush1.xpose.msra.mxu0 0.0
        %382 = vmatprep.subr.mxu0 0.0
        %383 = vmatpush1.xpose.msra.mxu0 0.0
        %384 = vmatprep.subr.mxu0 0.0
        %385 = vmatpush1.xpose.msra.mxu0 0.0
        %386 = vmatprep.mubr.f32.mxu0 0.0
        %387 = vmatmul.mubr.f32.gmra.mrb[0].mxu0 %v317
        %v388 = vpop.f32.mrb[0].mxu0
        %v389 = vadd.f32 %v310, %v388
        %v390 = vpop.f32.mrb[0].mxu0
        %391 = vdwg.mxu0
        %vm392 = vcmask 64512
        %v393 = vsel %vm392, %v389, -inf
        %394 = vmax.xlane.f32.xlu0 %v393
        %v395 = vpop.xlane.xlu0 %394
        %v396 = vsub.f32 %v389, %v395
        %v397 = vmul.f32 %v396, 1.442695
        %v398 = vpow.pop %v397
        %v399 = vsel %vm392, %v398, 0.0
        %400 = vadd.xlane.f32.xlu0 %v399
        %v401 = vpop.xlane.xlu0 %400
        %v403 = vsel %vm392, %v398, 0
        %405 = vmatprep.subr.mxu0 0.0
        %406 = vmatpush1.msra.mxu0 %v314
        %407 = vmatprep.subr.mxu0 0.0
        %408 = vmatpush1.msra.mxu0 0.0
        %409 = vmatprep.subr.mxu0 0.0
        %410 = vmatpush1.msra.mxu0 0.0
        %411 = vmatprep.subr.mxu0 0.0
        %412 = vmatpush1.msra.mxu0 0.0
        %413 = vmatprep.subr.mxu0 0.0
        %414 = vmatpush1.msra.mxu0 0.0
        %415 = vmatprep.subr.mxu0 0.0
        %416 = vmatpush1.msra.mxu0 0.0
        %417 = vmatprep.subr.mxu0 0.0
        %418 = vmatpush1.msra.mxu0 0.0
        %419 = vmatprep.subr.mxu0 0.0
        %420 = vmatpush1.msra.mxu0 0.0
        %421 = vmatprep.subr.mxu0 0.0
        %422 = vmatpush1.msra.mxu0 0.0
        %423 = vmatprep.subr.mxu0 0.0
        %424 = vmatpush1.msra.mxu0 0.0
        %425 = vmatprep.subr.mxu0 0.0
        %426 = vmatpush1.msra.mxu0 0.0
        %427 = vmatprep.subr.mxu0 0.0
        %428 = vmatpush1.msra.mxu0 0.0
        %429 = vmatprep.subr.mxu0 0.0
        %430 = vmatpush1.msra.mxu0 0.0
        %431 = vmatprep.subr.mxu0 0.0
        %432 = vmatpush1.msra.mxu0 0.0
        %433 = vmatprep.subr.mxu0 0.0
        %434 = vmatpush1.msra.mxu0 0.0
        %435 = vmatprep.subr.mxu0 0.0
        %436 = vmatpush1.msra.mxu0 0.0
        %437 = vmatprep.subr.mxu0 0.0
        %438 = vmatpush1.msra.mxu0 0.0
        %439 = vmatprep.subr.mxu0 0.0
        %440 = vmatpush1.msra.mxu0 0.0
        %441 = vmatprep.subr.mxu0 0.0
        %442 = vmatpush1.msra.mxu0 0.0
        %443 = vmatprep.subr.mxu0 0.0
        %444 = vmatpush1.msra.mxu0 0.0
        %445 = vmatprep.subr.mxu0 0.0
        %446 = vmatpush1.msra.mxu0 0.0
        %447 = vmatprep.subr.mxu0 0.0
        %448 = vmatpush1.msra.mxu0 0.0
        %449 = vmatprep.subr.mxu0 0.0
        %450 = vmatpush1.msra.mxu0 0.0
        %451 = vmatprep.subr.mxu0 0.0
        %452 = vmatpush1.msra.mxu0 0.0
        %453 = vmatprep.subr.mxu0 0.0
        %454 = vmatpush1.msra.mxu0 0.0
        %455 = vmatprep.subr.mxu0 0.0
        %456 = vmatpush1.msra.mxu0 0.0
        %457 = vmatprep.subr.mxu0 0.0
        %458 = vmatpush1.msra.mxu0 0.0
        %459 = vmatprep.subr.mxu0 0.0
        %460 = vmatpush1.msra.mxu0 0.0
        %461 = vmatprep.subr.mxu0 0.0
        %462 = vmatpush1.msra.mxu0 0.0
        %463 = vmatprep.subr.mxu0 0.0
        %464 = vmatpush1.msra.mxu0 0.0
        %465 = vmatprep.subr.mxu0 0.0
        %466 = vmatpush1.msra.mxu0 0.0
        %467 = vmatprep.subr.mxu0 0.0
        %468 = vmatpush1.msra.mxu0 0.0
        %469 = vmatprep.mubr.f32.mxu0 0.0
        %470 = vmatmul.mubr.f32.gmra.mrb[0].mxu0 %v403
        %v471 = vpop.f32.mrb[0].mxu0
        %v472 = vadd.f32 0.0, %v471
        %v473 = vpop.f32.mrb[0].mxu0
        %474 = vdwg.mxu0
        %v475 = vrcp.pop %v401
        %v476 = vmul.f32 %v472, %v475
        %477 = vst.msk [vmem:[%s309] sm:$0xff] %vm315, %v476
        %v478 = vld [vmem:[%s257] sm:$0xff]
        %v479 = vmul.f32 %v478, 0.17677669
        %v480 = vld [vmem:[%s266] sm:$0xff]
        %v481 = vld [vmem:[%s275] sm:$0xff]
        %483 = vrot.lane.b32.xlu0 %v479, 96
        %v484 = vpop.permute.xlu0 %483
        %486 = vrot.lane.b32.xlu0 %v480, 96
        %v487 = vpop.permute.xlu0 %486
        %v488 = vsel %vm315, %v484, 0
        %v490 = vsel %vm315, %v487, 0
        %492 = vmatprep.subr.mxu0 0.0
        %493 = vmatpush1.xpose.msra.mxu0 %v490
        %494 = vmatprep.subr.mxu0 0.0
        %495 = vmatpush1.xpose.msra.mxu0 0.0
        %496 = vmatprep.subr.mxu0 0.0
        %497 = vmatpush1.xpose.msra.mxu0 0.0
        %498 = vmatprep.subr.mxu0 0.0
        %499 = vmatpush1.xpose.msra.mxu0 0.0
        %500 = vmatprep.subr.mxu0 0.0
        %501 = vmatpush1.xpose.msra.mxu0 0.0
        %502 = vmatprep.subr.mxu0 0.0
        %503 = vmatpush1.xpose.msra.mxu0 0.0
        %504 = vmatprep.subr.mxu0 0.0
        %505 = vmatpush1.xpose.msra.mxu0 0.0
        %506 = vmatprep.subr.mxu0 0.0
        %507 = vmatpush1.xpose.msra.mxu0 0.0
        %508 = vmatprep.subr.mxu0 0.0
        %509 = vmatpush1.xpose.msra.mxu0 0.0
        %510 = vmatprep.subr.mxu0 0.0
        %511 = vmatpush1.xpose.msra.mxu0 0.0
        %512 = vmatprep.subr.mxu0 0.0
        %513 = vmatpush1.xpose.msra.mxu0 0.0
        %514 = vmatprep.subr.mxu0 0.0
        %515 = vmatpush1.xpose.msra.mxu0 0.0
        %516 = vmatprep.subr.mxu0 0.0
        %517 = vmatpush1.xpose.msra.mxu0 0.0
        %518 = vmatprep.subr.mxu0 0.0
        %519 = vmatpush1.xpose.msra.mxu0 0.0
        %520 = vmatprep.subr.mxu0 0.0
        %521 = vmatpush1.xpose.msra.mxu0 0.0
        %522 = vmatprep.subr.mxu0 0.0
        %523 = vmatpush1.xpose.msra.mxu0 0.0
        %524 = vmatprep.subr.mxu0 0.0
        %525 = vmatpush1.xpose.msra.mxu0 0.0
        %526 = vmatprep.subr.mxu0 0.0
        %527 = vmatpush1.xpose.msra.mxu0 0.0
        %528 = vmatprep.subr.mxu0 0.0
        %529 = vmatpush1.xpose.msra.mxu0 0.0
        %530 = vmatprep.subr.mxu0 0.0
        %531 = vmatpush1.xpose.msra.mxu0 0.0
        %532 = vmatprep.subr.mxu0 0.0
        %533 = vmatpush1.xpose.msra.mxu0 0.0
        %534 = vmatprep.subr.mxu0 0.0
        %535 = vmatpush1.xpose.msra.mxu0 0.0
        %536 = vmatprep.subr.mxu0 0.0
        %537 = vmatpush1.xpose.msra.mxu0 0.0
        %538 = vmatprep.subr.mxu0 0.0
        %539 = vmatpush1.xpose.msra.mxu0 0.0
        %540 = vmatprep.subr.mxu0 0.0
        %541 = vmatpush1.xpose.msra.mxu0 0.0
        %542 = vmatprep.subr.mxu0 0.0
        %543 = vmatpush1.xpose.msra.mxu0 0.0
        %544 = vmatprep.subr.mxu0 0.0
        %545 = vmatpush1.xpose.msra.mxu0 0.0
        %546 = vmatprep.subr.mxu0 0.0
        %547 = vmatpush1.xpose.msra.mxu0 0.0
        %548 = vmatprep.subr.mxu0 0.0
        %549 = vmatpush1.xpose.msra.mxu0 0.0
        %550 = vmatprep.subr.mxu0 0.0
        %551 = vmatpush1.xpose.msra.mxu0 0.0
        %552 = vmatprep.subr.mxu0 0.0
        %553 = vmatpush1.xpose.msra.mxu0 0.0
        %554 = vmatprep.subr.mxu0 0.0
        %555 = vmatpush1.xpose.msra.mxu0 0.0
        %556 = vmatprep.mubr.f32.mxu0 0.0
        %557 = vmatmul.mubr.f32.gmra.mrb[0].mxu0 %v488
        %v558 = vpop.f32.mrb[0].mxu0
        %v559 = vadd.f32 %v310, %v558
        %v560 = vpop.f32.mrb[0].mxu0
        %561 = vdwg.mxu0
        %v562 = vsel %vm392, %v559, -inf
        %563 = vmax.xlane.f32.xlu0 %v562
        %v564 = vpop.xlane.xlu0 %563
        %v565 = vsub.f32 %v559, %v564
        %v566 = vmul.f32 %v565, 1.442695
        %v567 = vpow.pop %v566
        %v568 = vsel %vm392, %v567, 0.0
        %569 = vadd.xlane.f32.xlu0 %v568
        %v570 = vpop.xlane.xlu0 %569
        %572 = vrot.lane.b32.xlu0 %v481, 96
        %v573 = vpop.permute.xlu0 %572
        %v576 = vsel %vm392, %v567, 0
        %578 = vmatprep.subr.mxu0 0.0
        %579 = vmatpush1.msra.mxu0 %v573
        %580 = vmatprep.subr.mxu0 0.0
        %581 = vmatpush1.msra.mxu0 0.0
        %582 = vmatprep.subr.mxu0 0.0
        %583 = vmatpush1.msra.mxu0 0.0
        %584 = vmatprep.subr.mxu0 0.0
        %585 = vmatpush1.msra.mxu0 0.0
        %586 = vmatprep.subr.mxu0 0.0
        %587 = vmatpush1.msra.mxu0 0.0
        %588 = vmatprep.subr.mxu0 0.0
        %589 = vmatpush1.msra.mxu0 0.0
        %590 = vmatprep.subr.mxu0 0.0
        %591 = vmatpush1.msra.mxu0 0.0
        %592 = vmatprep.subr.mxu0 0.0
        %593 = vmatpush1.msra.mxu0 0.0
        %594 = vmatprep.subr.mxu0 0.0
        %595 = vmatpush1.msra.mxu0 0.0
        %596 = vmatprep.subr.mxu0 0.0
        %597 = vmatpush1.msra.mxu0 0.0
        %598 = vmatprep.subr.mxu0 0.0
        %599 = vmatpush1.msra.mxu0 0.0
        %600 = vmatprep.subr.mxu0 0.0
        %601 = vmatpush1.msra.mxu0 0.0
        %602 = vmatprep.subr.mxu0 0.0
        %603 = vmatpush1.msra.mxu0 0.0
        %604 = vmatprep.subr.mxu0 0.0
        %605 = vmatpush1.msra.mxu0 0.0
        %606 = vmatprep.subr.mxu0 0.0
        %607 = vmatpush1.msra.mxu0 0.0
        %608 = vmatprep.subr.mxu0 0.0
        %609 = vmatpush1.msra.mxu0 0.0
        %610 = vmatprep.subr.mxu0 0.0
        %611 = vmatpush1.msra.mxu0 0.0
        %612 = vmatprep.subr.mxu0 0.0
        %613 = vmatpush1.msra.mxu0 0.0
        %614 = vmatprep.subr.mxu0 0.0
        %615 = vmatpush1.msra.mxu0 0.0
        %616 = vmatprep.subr.mxu0 0.0
        %617 = vmatpush1.msra.mxu0 0.0
        %618 = vmatprep.subr.mxu0 0.0
        %619 = vmatpush1.msra.mxu0 0.0
        %620 = vmatprep.subr.mxu0 0.0
        %621 = vmatpush1.msra.mxu0 0.0
        %622 = vmatprep.subr.mxu0 0.0
        %623 = vmatpush1.msra.mxu0 0.0
        %624 = vmatprep.subr.mxu0 0.0
        %625 = vmatpush1.msra.mxu0 0.0
        %626 = vmatprep.subr.mxu0 0.0
        %627 = vmatpush1.msra.mxu0 0.0
        %628 = vmatprep.subr.mxu0 0.0
        %629 = vmatpush1.msra.mxu0 0.0
        %630 = vmatprep.subr.mxu0 0.0
        %631 = vmatpush1.msra.mxu0 0.0
        %632 = vmatprep.subr.mxu0 0.0
        %633 = vmatpush1.msra.mxu0 0.0
        %634 = vmatprep.subr.mxu0 0.0
        %635 = vmatpush1.msra.mxu0 0.0
        %636 = vmatprep.subr.mxu0 0.0
        %637 = vmatpush1.msra.mxu0 0.0
        %638 = vmatprep.subr.mxu0 0.0
        %639 = vmatpush1.msra.mxu0 0.0
        %640 = vmatprep.subr.mxu0 0.0
        %641 = vmatpush1.msra.mxu0 0.0
        %642 = vmatprep.mubr.f32.mxu0 0.0
        %643 = vmatmul.mubr.f32.gmra.mrb[0].mxu0 %v576
        %v644 = vpop.f32.mrb[0].mxu0
        %v645 = vadd.f32 0.0, %v644
        %v646 = vpop.f32.mrb[0].mxu0
        %647 = vdwg.mxu0
        %v648 = vrcp.pop %v570
        %v649 = vmul.f32 %v645, %v648
        %651 = vrot.lane.b32.xlu0 %v649, 32
        %v652 = vpop.permute.xlu0 %651
        %vm654 = vcmask 523520
        %655 = vst.msk [vmem:[%s309] sm:$0xff] %vm654, %v652
        %s656 = sand.u32 %s151, 1
        %s657 = scalar_lea.sflag [#allocation4], %s656
        %s658 = sand.u32 %s151, 1
        %s659 = smul.addr %s658, 8
        %s660 = scalar_lea.vmem [#allocation8], %s659
        // Predicated region
        $region49: #{tpu_custom_call.1} parent=35 // pred_check
          %p661 = pneg %p161
        $region50: #{tpu_custom_call.1} parent=35 // pred_check_branch
          %663 = sbr.rel (%p661) target = $region52
        $region51: #{tpu_custom_call.1} parent=35 // pred_region
          %s665 = ssub.s32 128, 128
          %666 = vsyncadd %s657, %s665
          %s667 = smul.addr %s28, 2
          %s668 = sadd.s32 %s29, %s667
          %s669 = smul.addr %s668, 128
          %s670 = scalar_lea.hbm %s4, %s669
          %s672 = sshll.u32 %s660, 4
          %s673 = int_to_ptr.vmem [resolvable:$true] %s672
          %675 = dma.vmem_to_hbm [thread:$0]  %s673, 128, %s670, %s657
        $region52: #{tpu_custom_call.1} parent=35 // pred_fallthru
          _
      $region36: #{tpu_custom_call.1} parent=5 // pred_fallthru
        _
      %p676 = scmp.le.s32.totalorder 2, %s19
      // Predicated region
      $region53: #{tpu_custom_call.1} parent=5 // pred_check
        %p677 = pneg %p676
      $region54: #{tpu_custom_call.1} parent=5 // pred_check_branch
        %679 = sbr.rel (%p677) target = $region56
      $region55: #{tpu_custom_call.1} parent=5 // pred_region
        %s680 = ssub.s32 %s19, 2
        // Predicated region
        $region57: #{tpu_custom_call.1} parent=55 // pred_check
          %p681 = pneg %p167
        $region58: #{tpu_custom_call.1} parent=55 // pred_check_branch
          %683 = sbr.rel (%p681) target = $region60
        $region59: #{tpu_custom_call.1} parent=55 // pred_region
          %s684 = sand.u32 %s152, 1
          %s685 = scalar_lea.sflag [#allocation4], %s684
          %s686 = sand.u32 %s152, 1
          %s687 = smul.addr %s686, 8
          %s688 = scalar_lea.vmem [#allocation8], %s687
          %689 = dma.done %s685, 128
        $region60: #{tpu_custom_call.1} parent=55 // pred_fallthru
          _
      $region56: #{tpu_custom_call.1} parent=5 // pred_fallthru
        _
    $region6: #{tpu_custom_call.1} parent=1 // loop_footer
      %s23 = sadd.s32 1, %s19
    $region7: #{tpu_custom_call.1} parent=1 // loop_footer_branch
      %18 = sbr.rel target = $region3
    $region8: #{tpu_custom_call.1} parent=1 // loop_exit
      _
    %690 = vsyncpa [#allocation3], 1
    %s691 = scalar_lea.sflag [#allocation3], 1
    %692 = vsyncpa %s691, 1
    %693 = vsyncpa [#allocation6], 1
    %s694 = scalar_lea.sflag [#allocation6], 1
    %695 = vsyncpa %s694, 1
    %696 = vsyncpa [#allocation4], 1
    %s697 = scalar_lea.sflag [#allocation4], 1
    %698 = vsyncpa %s697, 1

</llo_original>
